<compile_context>
chip_gen: v5e
topology: v5e:2x2
jax: 0.10.0
libtpu: 0.0.40
codegen_flags: <defaults>
</compile_context>

<pallas_src>
import functools

import jax
import jax.numpy as jnp
from jax.experimental import pallas as pl
from jax.experimental.pallas import tpu as pltpu


def _phosc_loss_kernel(phos_y_ref, phos_t_ref, phoc_y_ref, phoc_t_ref,   # inputs
                       out_ref,                                          # output
                       acc_ref,                                          # scratch
                       *, c_mse, c_ce, tb, batch, tiles_per_split,
                       targets_normalized, needs_mask):
    split = pl.program_id(0)     # (up-to-)2-way core split, "parallel"
    step = pl.program_id(1)      # batch-tile reduction axis, "arbitrary"

    # ---- init per-split accumulator on the first batch tile
    @pl.when(step == 0)
    def _():
        acc_ref[...] = jnp.zeros_like(acc_ref)

    # ---- loads (bf16 inputs upcast here; keeps HBM traffic low)
    yp = phos_y_ref[...].astype(jnp.float32)      # (tb, D)
    tp = phos_t_ref[...].astype(jnp.float32)      # (tb, D)
    logits = phoc_y_ref[...].astype(jnp.float32)  # (tb, C)
    t = phoc_t_ref[...].astype(jnp.float32)       # (tb, C)

    valid = None
    if needs_mask:
        # Mask ragged / duplicated rows BEFORE any arithmetic (esp. exp) so
        # garbage OOB data can never produce Inf/NaN.
        row = jax.lax.broadcasted_iota(jnp.int32, (tb, 1), 0)       # (tb, 1)
        row_start = (split * tiles_per_split + step) * tb
        valid = (row_start + row) < batch                           # (tb, 1) bool
        zf = jnp.float32(0.0)
        yp = jnp.where(valid, yp, zf)
        tp = jnp.where(valid, tp, zf)
        logits = jnp.where(valid, logits, zf)
        t = jnp.where(valid, t, zf)

    # ---- phos head: per-row sum of squared errors
    diff = yp - tp
    sq_row = jnp.sum(diff * diff, axis=-1, keepdims=True)           # (tb, 1)

    # ---- phoc head: cross entropy with probability targets (folded log-softmax;
    #      log_probs never materialized)
    m = jnp.max(logits, axis=-1, keepdims=True)                     # (tb, 1)
    shifted = logits - m                                            # (tb, C)
    lse = jnp.log(jnp.sum(jnp.exp(shifted), axis=-1, keepdims=True))  # (tb, 1)
    t_dot = jnp.sum(t * shifted, axis=-1, keepdims=True)            # (tb, 1)
    if targets_normalized:
        ce_row = lse - t_dot                                        # sum(t) == 1
    else:
        t_sum = jnp.sum(t, axis=-1, keepdims=True)                  # (tb, 1)
        ce_row = lse * t_sum - t_dot                                # (tb, 1)

    # ---- per-row weighted contribution; deferred collapse (plain VPU add)
    contrib = sq_row * c_mse + ce_row * c_ce                        # (tb, 1)
    if needs_mask and targets_normalized:
        # masked rows have lse = log(C) != 0 in the normalized formulation
        contrib = jnp.where(valid, contrib, jnp.float32(0.0))
    acc_ref[...] += contrib

    # ---- finalize on the last batch tile of this split: reduce to scalar, store
    @pl.when(step == pl.num_programs(1) - 1)
    def _():
        part = jnp.sum(acc_ref[...], axis=0, keepdims=True)         # (1, 1)
        out_ref[...] = jnp.broadcast_to(part, out_ref.shape)        # (8, 128) block


def phosc_loss(y_phos, t_phos, y_phoc, t_phoc,
               phos_w=4.5, phoc_w=1.0, block_b=512, targets_normalized=False):
    """PHOSC loss. Inputs are 2D (batch, features); f32 or bf16. Returns f32 scalar.

    Only soft/probability phoc targets are supported (the tensor form of
    F.cross_entropy); class-index targets are not implemented.
    """
    B, D = y_phos.shape
    Bc, C = y_phoc.shape
    assert B == Bc, "phos/phoc batch sizes must match"
    assert t_phos.shape == (B, D) and t_phoc.shape == (B, C)

    # Batch tile: multiple of 8 (sublane), capped by block_b, >= 8.
    tb = min(int(block_b), ((B + 7) // 8) * 8)
    tb = max(8, (tb // 8) * 8)
    n_tiles = pl.cdiv(B, tb)

    # Split tiles across (up to) two TensorCores when there is enough work.
    # On single-TC chips (v5e/v6e) this is just a sequential outer loop.
    num_splits = 2 if n_tiles >= 2 else 1
    tiles_per_split = pl.cdiv(n_tiles, num_splits)
    covered = num_splits * tiles_per_split * tb
    needs_mask = covered != B           # ragged last tile and/or duplicated tiles

    # Weights / divisors folded into per-row coefficients (TRUE, unpadded counts).
    c_mse = float(phos_w) / float(B * D)
    c_ce = float(phoc_w) / float(B)

    def in_map(c, i):
        # Clamp so overflow/duplicate steps stay in-bounds; their rows are masked
        # to zero inside the kernel.
        return (jnp.minimum(c * tiles_per_split + i, n_tiles - 1), 0)

    kernel = functools.partial(
        _phosc_loss_kernel,
        c_mse=c_mse, c_ce=c_ce, tb=tb, batch=B,
        tiles_per_split=tiles_per_split,
        targets_normalized=bool(targets_normalized),
        needs_mask=bool(needs_mask),
    )

    # Explicit VMEM budget: double-buffered inputs + f32 CE temporaries, with
    # margin.  Floor 16 MiB, cap 64 MiB (v7x physical).  Keeps full double
    # buffering for tb >= 512 on v5e's 16 MiB scoped default.
    in_row_bytes = (2 * D * jnp.dtype(y_phos.dtype).itemsize
                    + 2 * C * jnp.dtype(y_phoc.dtype).itemsize)
    vmem_est = 2 * tb * in_row_bytes + 4 * tb * 4 * (C + D) + (2 << 20)
    vmem_limit = int(min(max(2 * vmem_est, 16 << 20), 64 << 20))

    out = pl.pallas_call(
        kernel,
        out_shape=jax.ShapeDtypeStruct((num_splits * 8, 128), jnp.float32),
        grid_spec=pltpu.PrefetchScalarGridSpec(
            num_scalar_prefetch=0,
            grid=(num_splits, tiles_per_split),
            in_specs=[
                pl.BlockSpec((tb, D), in_map),
                pl.BlockSpec((tb, D), in_map),
                pl.BlockSpec((tb, C), in_map),
                pl.BlockSpec((tb, C), in_map),
            ],
            out_specs=pl.BlockSpec((8, 128), lambda c, i: (c, 0)),
            scratch_shapes=[
                pltpu.VMEM((tb, 1), jnp.float32),   # per-row weighted partial sums
            ],
        ),
        compiler_params=pltpu.CompilerParams(
            dimension_semantics=("parallel", "arbitrary"),
            vmem_limit_bytes=vmem_limit,
        ),
    )(y_phos, t_phos, y_phoc, t_phoc)

    # Per-split weighted partials (value broadcast across each (8,128) block).
    return jnp.sum(out[::8, 0])


def _reference_loss(y_phos, t_phos, y_phoc, t_phoc, phos_w=4.5, phoc_w=1.0):
    y_phos = y_phos.astype(jnp.float32)
    t_phos = t_phos.astype(jnp.float32)
    y_phoc = y_phoc.astype(jnp.float32)
    t_phoc = t_phoc.astype(jnp.float32)
    mse = jnp.mean((y_phos - t_phos) ** 2)
    logp = jax.nn.log_softmax(y_phoc, axis=-1)
    ce = jnp.mean(-jnp.sum(t_phoc * logp, axis=-1))
    return phos_w * mse + phoc_w * ce


if __name__ == "__main__":
    key = jax.random.PRNGKey(0)
    k1, k2, k3, k4 = jax.random.split(key, 4)

    B = 30          # NOT a multiple of 8 -> exercises in-kernel ragged-row masking
    PHOS_D = 165    # real PHOS vector length (non-128-multiple lane dim)
    PHOC_C = 604    # real PHOC class count   (non-128-multiple lane dim)

    y_phos = jax.random.normal(k1, (B, PHOS_D), dtype=jnp.float32)
    t_phos = jax.random.normal(k2, (B, PHOS_D), dtype=jnp.float32)
    y_phoc = jax.random.normal(k3, (B, PHOC_C), dtype=jnp.float32)
    # soft probability targets for cross_entropy (rows sum to 1)
    t_phoc = jax.nn.softmax(
        jax.random.normal(k4, (B, PHOC_C), dtype=jnp.float32), axis=-1)

    ref = _reference_loss(y_phos, t_phos, y_phoc, t_phoc, phos_w=4.5, phoc_w=1.0)

    # Small tiles: 2-way split x 2 steps, duplicated/ragged tiles masked in-kernel,
    # normalized-target fast path.
    loss_small = phosc_loss(y_phos, t_phos, y_phoc, t_phoc,
                            phos_w=4.5, phoc_w=1.0, block_b=8,
                            targets_normalized=True)
    loss_small = jax.block_until_ready(loss_small)
    assert jnp.allclose(loss_small, ref, rtol=1e-5, atol=1e-5), (loss_small, ref)

    # Default (large) tile: single split / single step, generic soft-target path.
    loss_big = phosc_loss(y_phos, t_phos, y_phoc, t_phoc,
                          phos_w=4.5, phoc_w=1.0)
    loss_big = jax.block_until_ready(loss_big)
    assert jnp.allclose(loss_big, ref, rtol=1e-5, atol=1e-5), (loss_big, ref)

    print("KERNEL_OK")
</pallas_src>

<mosaic_0001>
module attributes {stable_mosaic.version = 11 : i64} {
  func.func @_phosc_loss_kernel(%arg0: i32, %arg1: i32, %arg2: memref<8x165xf32, #tpu.memory_space<vmem>>, %arg3: memref<8x165xf32, #tpu.memory_space<vmem>>, %arg4: memref<8x604xf32, #tpu.memory_space<vmem>>, %arg5: memref<8x604xf32, #tpu.memory_space<vmem>>, %arg6: memref<8x128xf32, #tpu.memory_space<vmem>>, %arg7: memref<8x1xf32, #tpu.memory_space<vmem>>) attributes {dimension_semantics = [#tpu.dimension_semantics<parallel>, #tpu.dimension_semantics<arbitrary>], iteration_bounds = array<i64: 2, 2>, scalar_prefetch = 0 : i64, scratch_operands = 1 : i64, tpu.core_type = #tpu.core_type<tc>, window_params = [{transform_indices = @transform_0, window_bounds = array<i64: 8, 165>}, {transform_indices = @transform_1, window_bounds = array<i64: 8, 165>}, {transform_indices = @transform_2, window_bounds = array<i64: 8, 604>}, {transform_indices = @transform_3, window_bounds = array<i64: 8, 604>}, {transform_indices = @transform_4, window_bounds = array<i64: 8, 128>}]} {
    %c0_i32 = arith.constant 0 : i32
    %0 = arith.cmpi eq, %arg1, %c0_i32 : i32
    %1 = arith.extui %0 : i1 to i32
    %c0_i32_0 = arith.constant 0 : i32
    %2 = arith.cmpi ne, %1, %c0_i32_0 : i32
    scf.if %2 {
      %cst_23 = arith.constant 0.000000e+00 : f32
      %60 = vector.broadcast %cst_23 : f32 to vector<8x1xf32>
      %c0_24 = arith.constant 0 : index
      %c0_25 = arith.constant 0 : index
      %61 = vector.load %arg7[%c0_24, %c0_25] : memref<8x1xf32, #tpu.memory_space<vmem>>, vector<8x1xf32>
      tpu.vector_store %arg7[%c0_24, %c0_25], %60 {strides = array<i32>} : memref<8x1xf32, #tpu.memory_space<vmem>>, vector<8x1xf32>,
    } else {
    }
    %c0 = arith.constant 0 : index
    %c0_1 = arith.constant 0 : index
    %3 = vector.load %arg2[%c0, %c0_1] : memref<8x165xf32, #tpu.memory_space<vmem>>, vector<8x165xf32>
    %c0_2 = arith.constant 0 : index
    %c0_3 = arith.constant 0 : index
    %4 = vector.load %arg3[%c0_2, %c0_3] : memref<8x165xf32, #tpu.memory_space<vmem>>, vector<8x165xf32>
    %c0_4 = arith.constant 0 : index
    %c0_5 = arith.constant 0 : index
    %5 = vector.load %arg4[%c0_4, %c0_5] : memref<8x604xf32, #tpu.memory_space<vmem>>, vector<8x604xf32>
    %c0_6 = arith.constant 0 : index
    %c0_7 = arith.constant 0 : index
    %6 = vector.load %arg5[%c0_6, %c0_7] : memref<8x604xf32, #tpu.memory_space<vmem>>, vector<8x604xf32>
    %7 = tpu.iota {dimensions = array<i32: 0>} : vector<8x1xi32>
    %c2_i32 = arith.constant 2 : i32
    %8 = arith.muli %arg0, %c2_i32 : i32
    %9 = arith.addi %8, %arg1 : i32
    %c8_i32 = arith.constant 8 : i32
    %10 = arith.muli %9, %c8_i32 : i32
    %11 = vector.broadcast %10 : i32 to vector<8x1xi32>
    %12 = arith.addi %11, %7 : vector<8x1xi32>
    %c30_i32 = arith.constant 30 : i32
    %13 = vector.broadcast %c30_i32 : i32 to vector<8x1xi32>
    %14 = arith.cmpi slt, %12, %13 : vector<8x1xi32>
    %cst = arith.constant 0.000000e+00 : f32
    %15 = vector.shape_cast %14 : vector<8x1xi1> to vector<8x1xi1>
    %16 = vector.broadcast %15 : vector<8x1xi1> to vector<8x165xi1>
    %17 = vector.broadcast %cst : f32 to vector<8x165xf32>
    %18 = arith.select %16, %3, %17 : vector<8x165xi1>, vector<8x165xf32>
    %cst_8 = arith.constant 0.000000e+00 : f32
    %19 = vector.shape_cast %14 : vector<8x1xi1> to vector<8x1xi1>
    %20 = vector.broadcast %19 : vector<8x1xi1> to vector<8x165xi1>
    %21 = vector.broadcast %cst_8 : f32 to vector<8x165xf32>
    %22 = arith.select %20, %4, %21 : vector<8x165xi1>, vector<8x165xf32>
    %cst_9 = arith.constant 0.000000e+00 : f32
    %23 = vector.shape_cast %14 : vector<8x1xi1> to vector<8x1xi1>
    %24 = vector.broadcast %23 : vector<8x1xi1> to vector<8x604xi1>
    %25 = vector.broadcast %cst_9 : f32 to vector<8x604xf32>
    %26 = arith.select %24, %5, %25 : vector<8x604xi1>, vector<8x604xf32>
    %cst_10 = arith.constant 0.000000e+00 : f32
    %27 = vector.shape_cast %14 : vector<8x1xi1> to vector<8x1xi1>
    %28 = vector.broadcast %27 : vector<8x1xi1> to vector<8x604xi1>
    %29 = vector.broadcast %cst_10 : f32 to vector<8x604xf32>
    %30 = arith.select %28, %6, %29 : vector<8x604xi1>, vector<8x604xf32>
    %31 = arith.subf %18, %22 : vector<8x165xf32>
    %32 = arith.mulf %31, %31 : vector<8x165xf32>
    %cst_11 = arith.constant dense<0.000000e+00> : vector<8xf32>
    %33 = vector.multi_reduction <add>, %32, %cst_11 [1] : vector<8x165xf32> to vector<8xf32>
    %34 = vector.shape_cast %33 : vector<8xf32> to vector<8x1xf32>
    %cst_12 = arith.constant dense<0xFF800000> : vector<8xf32>
    %35 = vector.multi_reduction <maximumf>, %26, %cst_12 [1] : vector<8x604xf32> to vector<8xf32>
    %36 = vector.shape_cast %35 : vector<8xf32> to vector<8x1xf32>
    %37 = vector.broadcast %36 : vector<8x1xf32> to vector<8x604xf32>
    %38 = arith.subf %26, %37 : vector<8x604xf32>
    %39 = math.exp %38 : vector<8x604xf32>
    %cst_13 = arith.constant dense<0.000000e+00> : vector<8xf32>
    %40 = vector.multi_reduction <add>, %39, %cst_13 [1] : vector<8x604xf32> to vector<8xf32>
    %41 = vector.shape_cast %40 : vector<8xf32> to vector<8x1xf32>
    %42 = math.log %41 : vector<8x1xf32>
    %43 = arith.mulf %30, %38 : vector<8x604xf32>
    %cst_14 = arith.constant dense<0.000000e+00> : vector<8xf32>
    %44 = vector.multi_reduction <add>, %43, %cst_14 [1] : vector<8x604xf32> to vector<8xf32>
    %45 = vector.shape_cast %44 : vector<8xf32> to vector<8x1xf32>
    %46 = arith.subf %42, %45 : vector<8x1xf32>
    %cst_15 = arith.constant 9.09090915E-4 : f32
    %47 = vector.broadcast %cst_15 : f32 to vector<8x1xf32>
    %48 = arith.mulf %34, %47 : vector<8x1xf32>
    %cst_16 = arith.constant 0.0333333351 : f32
    %49 = vector.broadcast %cst_16 : f32 to vector<8x1xf32>
    %50 = arith.mulf %46, %49 : vector<8x1xf32>
    %51 = arith.addf %48, %50 : vector<8x1xf32>
    %cst_17 = arith.constant 0.000000e+00 : f32
    %52 = vector.broadcast %cst_17 : f32 to vector<8x1xf32>
    %53 = arith.select %14, %51, %52 : vector<8x1xi1>, vector<8x1xf32>
    %c0_18 = arith.constant 0 : index
    %c0_19 = arith.constant 0 : index
    %54 = vector.load %arg7[%c0_18, %c0_19] : memref<8x1xf32, #tpu.memory_space<vmem>>, vector<8x1xf32>
    %55 = arith.addf %54, %53 : vector<8x1xf32>
    %c0_20 = arith.constant 0 : index
    %c0_21 = arith.constant 0 : index
    %56 = vector.load %arg7[%c0_20, %c0_21] : memref<8x1xf32, #tpu.memory_space<vmem>>, vector<8x1xf32>
    tpu.vector_store %arg7[%c0_20, %c0_21], %55 {strides = array<i32>} : memref<8x1xf32, #tpu.memory_space<vmem>>, vector<8x1xf32>,
    %c1_i32 = arith.constant 1 : i32
    %57 = arith.cmpi eq, %arg1, %c1_i32 : i32
    %58 = arith.extui %57 : i1 to i32
    %c0_i32_22 = arith.constant 0 : i32
    %59 = arith.cmpi ne, %58, %c0_i32_22 : i32
    scf.if %59 {
      %c0_23 = arith.constant 0 : index
      %c0_24 = arith.constant 0 : index
      %60 = vector.load %arg7[%c0_23, %c0_24] : memref<8x1xf32, #tpu.memory_space<vmem>>, vector<8x1xf32>
      %cst_25 = arith.constant dense<0.000000e+00> : vector<1xf32>
      %61 = vector.multi_reduction <add>, %60, %cst_25 [0] : vector<8x1xf32> to vector<1xf32>
      %62 = vector.shape_cast %61 : vector<1xf32> to vector<1x1xf32>
      %63 = vector.shape_cast %62 : vector<1x1xf32> to vector<1x1xf32>
      %64 = vector.broadcast %63 : vector<1x1xf32> to vector<8x128xf32>
      %c0_26 = arith.constant 0 : index
      %c0_27 = arith.constant 0 : index
      %65 = vector.load %arg6[%c0_26, %c0_27] : memref<8x128xf32, #tpu.memory_space<vmem>>, vector<8x128xf32>
      tpu.vector_store %arg6[%c0_26, %c0_27], %64 {strides = array<i32>} : memref<8x128xf32, #tpu.memory_space<vmem>>, vector<8x128xf32>,
    } else {
    }
    return
  }
  func.func @transform_0(%arg0: i32, %arg1: i32) -> (i32, i32) {
    %c2_i32 = arith.constant 2 : i32
    %0 = arith.muli %arg0, %c2_i32 : i32
    %1 = arith.addi %0, %arg1 : i32
    %c3_i32 = arith.constant 3 : i32
    %2 = arith.minsi %1, %c3_i32 : i32
    %c0_i32 = arith.constant 0 : i32
    %c0_i32_0 = arith.constant 0 : i32
    return %2, %c0_i32 : i32, i32
  }
  func.func @transform_1(%arg0: i32, %arg1: i32) -> (i32, i32) {
    %c2_i32 = arith.constant 2 : i32
    %0 = arith.muli %arg0, %c2_i32 : i32
    %1 = arith.addi %0, %arg1 : i32
    %c3_i32 = arith.constant 3 : i32
    %2 = arith.minsi %1, %c3_i32 : i32
    %c0_i32 = arith.constant 0 : i32
    %c0_i32_0 = arith.constant 0 : i32
    return %2, %c0_i32 : i32, i32
  }
  func.func @transform_2(%arg0: i32, %arg1: i32) -> (i32, i32) {
    %c2_i32 = arith.constant 2 : i32
    %0 = arith.muli %arg0, %c2_i32 : i32
    %1 = arith.addi %0, %arg1 : i32
    %c3_i32 = arith.constant 3 : i32
    %2 = arith.minsi %1, %c3_i32 : i32
    %c0_i32 = arith.constant 0 : i32
    %c0_i32_0 = arith.constant 0 : i32
    return %2, %c0_i32 : i32, i32
  }
  func.func @transform_3(%arg0: i32, %arg1: i32) -> (i32, i32) {
    %c2_i32 = arith.constant 2 : i32
    %0 = arith.muli %arg0, %c2_i32 : i32
    %1 = arith.addi %0, %arg1 : i32
    %c3_i32 = arith.constant 3 : i32
    %2 = arith.minsi %1, %c3_i32 : i32
    %c0_i32 = arith.constant 0 : i32
    %c0_i32_0 = arith.constant 0 : i32
    return %2, %c0_i32 : i32, i32
  }
  func.func @transform_4(%arg0: i32, %arg1: i32) -> (i32, i32) {
    %c0_i32 = arith.constant 0 : i32
    %c0_i32_0 = arith.constant 0 : i32
    return %arg0, %c0_i32 : i32, i32
  }
}

</mosaic_0001>

<llo_original>
// kernel: tpu_custom_call.1
$region0: #{tpu_custom_call.1}
  #allocation0 [shape = 'u32[]', space=smem, size = 0x4, offset = 0x4, fixed_abs, tag = 'smem constant byte address 0x4 - core index']
  #allocation1 [shape = 'u32[72,128]{1,0:T(1,128)}', space=vmem, size = 0x9000, scoped, tag = 'internal scratch']
  #allocation2 [shape = 'f32[8,1]{1,0:T(8,128)}', space=vmem, size = 0x1000, scoped, tag = 'scratch operand']
  %s0 = inlined_call_operand.hbm [shape: f32[30,165], index: 0, kind: input, shape index: {}]
  %s1 = inlined_call_operand.hbm [shape: f32[30,165], index: 1, kind: input, shape index: {}]
  %s2 = inlined_call_operand.hbm [shape: f32[30,604], index: 2, kind: input, shape index: {}]
  %s3 = inlined_call_operand.hbm [shape: f32[30,604], index: 3, kind: input, shape index: {}]
  %s4 = inlined_call_operand.hbm [shape: f32[16,128], index: 4, kind: output, shape index: {}]
  %s5 = sld [smem:[#allocation0]]
  $region73: #{tpu_custom_call.1} parent=0
    _
  %s7 = ssub.s32 1, %s5
  %s8 = scalar_select 0, %s7, %s5
  $region1: #{tpu_custom_call.1} parent=0
    #allocation3 [shape = 'u8[16384]{0}', space=vmem, size = 0x4000, scoped, tag = 'input window, operand 0']
    #allocation4 [shape = 's32[2]{0}', space=sflag, size = 0x8, scoped, tag = 'scoped memory for tpu_custom_call.1']
    #allocation5 [shape = 's32[2]{0}', space=sflag, size = 0x8, scoped, tag = 'scoped memory for tpu_custom_call.1']
    #allocation6 [shape = 'u8[16384]{0}', space=vmem, size = 0x4000, scoped, tag = 'input window, operand 1']
    #allocation7 [shape = 's32[2]{0}', space=sflag, size = 0x8, scoped, tag = 'scoped memory for tpu_custom_call.1']
    #allocation8 [shape = 'u8[40960]{0}', space=vmem, size = 0xa000, scoped, tag = 'input window, operand 2']
    #allocation9 [shape = 'u8[40960]{0}', space=vmem, size = 0xa000, scoped, tag = 'input window, operand 3']
    #allocation10 [shape = 's32[2]{0}', space=sflag, size = 0x8, scoped, tag = 'scoped memory for tpu_custom_call.1']
    #allocation11 [shape = 'u8[8192]{0}', space=vmem, size = 0x2000, scoped, tag = 'output window, operand 0']
    %9 = vsyncpa [#allocation4], 0
    %s10 = scalar_lea.sflag [#allocation4], 1
    %11 = vsyncpa %s10, 0
    %12 = vsyncpa [#allocation7], 0
    %s13 = scalar_lea.sflag [#allocation7], 1
    %14 = vsyncpa %s13, 0
    %15 = vsyncpa [#allocation10], 0
    %s16 = scalar_lea.sflag [#allocation10], 1
    %17 = vsyncpa %s16, 0
    %18 = vsyncpa [#allocation5], 0
    %s19 = scalar_lea.sflag [#allocation5], 1
    %20 = vsyncpa %s19, 0
    loop: start=0, step=1, limit=6
    $region2: #{tpu_custom_call.1} parent=1 // loop_pre_header
      _
    $region3: #{tpu_custom_call.1} parent=1 // loop_header
      %s22 = sphi 0, %s26
      %p23 = scmp.ge.s32.totalorder %s22, 6
      %s29 = sphi 0, %s41
      %s30 = sphi 0, %s37
      %s31 = sphi 0, %s29
      %s32 = sphi 0, %s30
      %s33 = sphi 0, %s31
      %s34 = sphi 0, %s32
      %s52 = sphi 0, %s54
      %s55 = sphi 0, %s52
      %s56 = sphi 0, %s55
      %s72 = sphi 0, %s56
      %s86 = sphi 0, %s88
      %s89 = sphi 0, %s86
      %s90 = sphi 0, %s89
      %s106 = sphi 0, %s90
      %s120 = sphi 0, %s122
      %s123 = sphi 0, %s120
      %s124 = sphi 0, %s123
      %s140 = sphi 0, %s124
      %s154 = sphi 0, %s156
      %s157 = sphi 0, %s154
      %s158 = sphi 0, %s157
      %s174 = sphi 0, %s158
      %s180 = sphi 0, %s182
      %s183 = sphi 0, %s180
      %s184 = sphi 0, %s183
      %s200 = sphi 0, %s184
    $region4: #{tpu_custom_call.1} parent=1 // loop_header_branch
      %25 = sbr.rel (%p23) target = $region8
    $region5: #{tpu_custom_call.1} parent=1 // loop_body
      %s27 = ssub.s32 %s22, 1
      %s28 = ssub.s32 %s22, 2
      %s35 = sadd.s32 1, %s30
      %p36 = scmp.ge.s32.totalorder %s35, 2
      %s37 = scalar_select %p36, 0, %s35
      %s38 = sadd.s32 1, %s29
      %s39 = scalar_select %p36, %s38, %s29
      %p40 = scmp.ge.s32.totalorder %s39, 2
      %s41 = scalar_select %p40, 0, %s39
      %s42 = smul.u32 %s29, 2
      %s43 = sadd.s32 %s42, %s30
      %p44 = scmp.lt.s32.totalorder %s43, 3
      %s45 = scalar_select %p44, %s43, 3
      %s46 = smul.u32 %s41, 2
      %s47 = sadd.s32 %s46, %s37
      %p48 = scmp.lt.s32.totalorder %s47, 3
      %s49 = scalar_select %p48, %s47, 3
      %s50 = ssub.s32 %s45, %s49
      %p51 = scmp.eq.s32.totalorder %s50, 0
      %s53 = sadd.s32 %s52, 1
      %s54 = scalar_select %p51, %s52, %s53
      %p57 = pneg %p51
      %p58 = scmp.eq.s32.totalorder %s22, 3
      %p59 = por %p57, %p58
      %p60 = scmp.ne.s32.totalorder %s52, %s55
      %p61 = scmp.eq.s32.totalorder %s22, 0
      %p62 = por %p60, %p61
      %p63 = scmp.ne.s32.totalorder %s52, %s55
      %p64 = scmp.eq.s32.totalorder %s27, 3
      %p65 = por %p63, %p64
      %p66 = scmp.ne.s32.totalorder %s55, %s56
      %p67 = scmp.eq.s32.totalorder %s27, 0
      %p68 = por %p66, %p67
      %p69 = scmp.ne.s32.totalorder %s55, %s56
      %p70 = scmp.eq.s32.totalorder %s28, 3
      %p71 = por %p69, %p70
      %p73 = scmp.ne.s32.totalorder %s56, %s72
      %p74 = scmp.eq.s32.totalorder %s28, 0
      %p75 = por %p73, %p74
      %s76 = smul.u32 %s29, 2
      %s77 = sadd.s32 %s76, %s30
      %p78 = scmp.lt.s32.totalorder %s77, 3
      %s79 = scalar_select %p78, %s77, 3
      %s80 = smul.u32 %s41, 2
      %s81 = sadd.s32 %s80, %s37
      %p82 = scmp.lt.s32.totalorder %s81, 3
      %s83 = scalar_select %p82, %s81, 3
      %s84 = ssub.s32 %s79, %s83
      %p85 = scmp.eq.s32.totalorder %s84, 0
      %s87 = sadd.s32 %s86, 1
      %s88 = scalar_select %p85, %s86, %s87
      %p91 = pneg %p85
      %p92 = scmp.eq.s32.totalorder %s22, 3
      %p93 = por %p91, %p92
      %p94 = scmp.ne.s32.totalorder %s86, %s89
      %p95 = scmp.eq.s32.totalorder %s22, 0
      %p96 = por %p94, %p95
      %p97 = scmp.ne.s32.totalorder %s86, %s89
      %p98 = scmp.eq.s32.totalorder %s27, 3
      %p99 = por %p97, %p98
      %p100 = scmp.ne.s32.totalorder %s89, %s90
      %p101 = scmp.eq.s32.totalorder %s27, 0
      %p102 = por %p100, %p101
      %p103 = scmp.ne.s32.totalorder %s89, %s90
      %p104 = scmp.eq.s32.totalorder %s28, 3
      %p105 = por %p103, %p104
      %p107 = scmp.ne.s32.totalorder %s90, %s106
      %p108 = scmp.eq.s32.totalorder %s28, 0
      %p109 = por %p107, %p108
      %s110 = smul.u32 %s29, 2
      %s111 = sadd.s32 %s110, %s30
      %p112 = scmp.lt.s32.totalorder %s111, 3
      %s113 = scalar_select %p112, %s111, 3
      %s114 = smul.u32 %s41, 2
      %s115 = sadd.s32 %s114, %s37
      %p116 = scmp.lt.s32.totalorder %s115, 3
      %s117 = scalar_select %p116, %s115, 3
      %s118 = ssub.s32 %s113, %s117
      %p119 = scmp.eq.s32.totalorder %s118, 0
      %s121 = sadd.s32 %s120, 1
      %s122 = scalar_select %p119, %s120, %s121
      %p125 = pneg %p119
      %p126 = scmp.eq.s32.totalorder %s22, 3
      %p127 = por %p125, %p126
      %p128 = scmp.ne.s32.totalorder %s120, %s123
      %p129 = scmp.eq.s32.totalorder %s22, 0
      %p130 = por %p128, %p129
      %p131 = scmp.ne.s32.totalorder %s120, %s123
      %p132 = scmp.eq.s32.totalorder %s27, 3
      %p133 = por %p131, %p132
      %p134 = scmp.ne.s32.totalorder %s123, %s124
      %p135 = scmp.eq.s32.totalorder %s27, 0
      %p136 = por %p134, %p135
      %p137 = scmp.ne.s32.totalorder %s123, %s124
      %p138 = scmp.eq.s32.totalorder %s28, 3
      %p139 = por %p137, %p138
      %p141 = scmp.ne.s32.totalorder %s124, %s140
      %p142 = scmp.eq.s32.totalorder %s28, 0
      %p143 = por %p141, %p142
      %s144 = smul.u32 %s29, 2
      %s145 = sadd.s32 %s144, %s30
      %p146 = scmp.lt.s32.totalorder %s145, 3
      %s147 = scalar_select %p146, %s145, 3
      %s148 = smul.u32 %s41, 2
      %s149 = sadd.s32 %s148, %s37
      %p150 = scmp.lt.s32.totalorder %s149, 3
      %s151 = scalar_select %p150, %s149, 3
      %s152 = ssub.s32 %s147, %s151
      %p153 = scmp.eq.s32.totalorder %s152, 0
      %s155 = sadd.s32 %s154, 1
      %s156 = scalar_select %p153, %s154, %s155
      %p159 = pneg %p153
      %p160 = scmp.eq.s32.totalorder %s22, 3
      %p161 = por %p159, %p160
      %p162 = scmp.ne.s32.totalorder %s154, %s157
      %p163 = scmp.eq.s32.totalorder %s22, 0
      %p164 = por %p162, %p163
      %p165 = scmp.ne.s32.totalorder %s154, %s157
      %p166 = scmp.eq.s32.totalorder %s27, 3
      %p167 = por %p165, %p166
      %p168 = scmp.ne.s32.totalorder %s157, %s158
      %p169 = scmp.eq.s32.totalorder %s27, 0
      %p170 = por %p168, %p169
      %p171 = scmp.ne.s32.totalorder %s157, %s158
      %p172 = scmp.eq.s32.totalorder %s28, 3
      %p173 = por %p171, %p172
      %p175 = scmp.ne.s32.totalorder %s158, %s174
      %p176 = scmp.eq.s32.totalorder %s28, 0
      %p177 = por %p175, %p176
      %s178 = ssub.s32 %s29, %s41
      %p179 = scmp.eq.s32.totalorder %s178, 0
      %s181 = sadd.s32 %s180, 1
      %s182 = scalar_select %p179, %s180, %s181
      %p185 = pneg %p179
      %p186 = scmp.eq.s32.totalorder %s22, 3
      %p187 = por %p185, %p186
      %p188 = scmp.ne.s32.totalorder %s180, %s183
      %p189 = scmp.eq.s32.totalorder %s22, 0
      %p190 = por %p188, %p189
      %p191 = scmp.ne.s32.totalorder %s180, %s183
      %p192 = scmp.eq.s32.totalorder %s27, 3
      %p193 = por %p191, %p192
      %p194 = scmp.ne.s32.totalorder %s183, %s184
      %p195 = scmp.eq.s32.totalorder %s27, 0
      %p196 = por %p194, %p195
      %p197 = scmp.ne.s32.totalorder %s183, %s184
      %p198 = scmp.eq.s32.totalorder %s28, 3
      %p199 = por %p197, %p198
      %p201 = scmp.ne.s32.totalorder %s184, %s200
      %p202 = scmp.eq.s32.totalorder %s28, 0
      %p203 = por %p201, %p202
      %p204 = scmp.le.s32.totalorder 1, %s22
      %p205 = scmp.lt.s32.totalorder %s22, 5
      %p206 = pnand %p204, %p205
      %p207 = pneg %p206
      // Predicated region
      $region9: #{tpu_custom_call.1} parent=5 // pred_check
        _
      $region10: #{tpu_custom_call.1} parent=5 // pred_check_branch
        %209 = sbr.rel (%p206) target = $region12
      $region11: #{tpu_custom_call.1} parent=5 // pred_region
        %s210 = ssub.s32 %s22, 1
      $region12: #{tpu_custom_call.1} parent=5 // pred_fallthru
        _
      %p211 = scmp.lt.s32.totalorder %s22, 4
      // Predicated region
      $region13: #{tpu_custom_call.1} parent=5 // pred_check
        %p212 = pneg %p211
      $region14: #{tpu_custom_call.1} parent=5 // pred_check_branch
        %214 = sbr.rel (%p212) target = $region16
      $region15: #{tpu_custom_call.1} parent=5 // pred_region
        // Predicated region
        $region17: #{tpu_custom_call.1} parent=15 // pred_check
          %p215 = pneg %p62
        $region18: #{tpu_custom_call.1} parent=15 // pred_check_branch
          %217 = sbr.rel (%p215) target = $region20
        $region19: #{tpu_custom_call.1} parent=15 // pred_region
          %s218 = sand.u32 %s52, 1
          %s219 = scalar_lea.sflag [#allocation4], %s218
          %s220 = sand.u32 %s52, 1
          %s221 = smul.addr %s220, 16
          %s222 = scalar_lea.vmem [#allocation3], %s221
          %s223 = smul.u32 %s29, 2
          %s224 = sadd.s32 %s223, %s30
          %p225 = scmp.lt.s32.totalorder %s224, 3
          %s226 = scalar_select %p225, %s224, 3
          %228 = vsyncadd %s219, 0
          %s229 = smul.addr %s226, 2
          %s230 = smul.addr %s229, 8
          %s231 = scalar_lea.hbm %s0, %s230
          %s233 = sshll.u32 %s231, 4
          %s234 = int_to_ptr.hbm [resolvable:$true] %s233
          %s235 = sshll.u32 %s222, 4
          %s236 = int_to_ptr.vmem [resolvable:$true] %s235
          %238 = dma.hbm_to_vmem [thread:$0]  %s234, 256, %s236, %s219
        $region20: #{tpu_custom_call.1} parent=15 // pred_fallthru
          _
        // Predicated region
        $region21: #{tpu_custom_call.1} parent=15 // pred_check
          %p239 = pneg %p96
        $region22: #{tpu_custom_call.1} parent=15 // pred_check_branch
          %241 = sbr.rel (%p239) target = $region24
        $region23: #{tpu_custom_call.1} parent=15 // pred_region
          %s242 = sand.u32 %s22, 1
          %s243 = scalar_lea.sflag [#allocation7], %s242
          %s244 = sand.u32 %s86, 1
          %s245 = smul.addr %s244, 16
          %s246 = scalar_lea.vmem [#allocation6], %s245
          %s247 = smul.u32 %s29, 2
          %s248 = sadd.s32 %s247, %s30
          %p249 = scmp.lt.s32.totalorder %s248, 3
          %s250 = scalar_select %p249, %s248, 3
          %252 = vsyncadd %s243, 0
          %s253 = smul.addr %s250, 2
          %s254 = smul.addr %s253, 8
          %s255 = scalar_lea.hbm %s1, %s254
          %s257 = sshll.u32 %s255, 4
          %s258 = int_to_ptr.hbm [resolvable:$true] %s257
          %s259 = sshll.u32 %s246, 4
          %s260 = int_to_ptr.vmem [resolvable:$true] %s259
          %262 = dma.hbm_to_vmem [thread:$0]  %s258, 256, %s260, %s243
        $region24: #{tpu_custom_call.1} parent=15 // pred_fallthru
          _
        // Predicated region
        $region25: #{tpu_custom_call.1} parent=15 // pred_check
          %p263 = pneg %p130
        $region26: #{tpu_custom_call.1} parent=15 // pred_check_branch
          %265 = sbr.rel (%p263) target = $region28
        $region27: #{tpu_custom_call.1} parent=15 // pred_region
          %s266 = sand.u32 %s22, 1
          %s267 = scalar_lea.sflag [#allocation7], %s266
          %s268 = sand.u32 %s120, 1
          %s269 = smul.addr %s268, 40
          %s270 = scalar_lea.vmem [#allocation8], %s269
          %s271 = smul.u32 %s29, 2
          %s272 = sadd.s32 %s271, %s30
          %p273 = scmp.lt.s32.totalorder %s272, 3
          %s274 = scalar_select %p273, %s272, 3
          %276 = vsyncadd %s267, 0
          %s277 = smul.addr %s274, 5
          %s278 = smul.addr %s277, 8
          %s279 = scalar_lea.hbm %s2, %s278
          %s281 = sshll.u32 %s279, 4
          %s282 = int_to_ptr.hbm [resolvable:$true] %s281
          %s283 = sshll.u32 %s270, 4
          %s284 = int_to_ptr.vmem [resolvable:$true] %s283
          %286 = dma.hbm_to_vmem [thread:$0]  %s282, 640, %s284, %s267
        $region28: #{tpu_custom_call.1} parent=15 // pred_fallthru
          _
        // Predicated region
        $region29: #{tpu_custom_call.1} parent=15 // pred_check
          %p287 = pneg %p164
        $region30: #{tpu_custom_call.1} parent=15 // pred_check_branch
          %289 = sbr.rel (%p287) target = $region32
        $region31: #{tpu_custom_call.1} parent=15 // pred_region
          %s290 = sand.u32 %s154, 1
          %s291 = scalar_lea.sflag [#allocation10], %s290
          %s292 = sand.u32 %s154, 1
          %s293 = smul.addr %s292, 40
          %s294 = scalar_lea.vmem [#allocation9], %s293
          %s295 = smul.u32 %s29, 2
          %s296 = sadd.s32 %s295, %s30
          %p297 = scmp.lt.s32.totalorder %s296, 3
          %s298 = scalar_select %p297, %s296, 3
          %300 = vsyncadd %s291, 0
          %s301 = smul.addr %s298, 5
          %s302 = smul.addr %s301, 8
          %s303 = scalar_lea.hbm %s3, %s302
          %s305 = sshll.u32 %s303, 4
          %s306 = int_to_ptr.hbm [resolvable:$true] %s305
          %s307 = sshll.u32 %s294, 4
          %s308 = int_to_ptr.vmem [resolvable:$true] %s307
          %310 = dma.hbm_to_vmem [thread:$0]  %s306, 640, %s308, %s291
        $region32: #{tpu_custom_call.1} parent=15 // pred_fallthru
          _
      $region16: #{tpu_custom_call.1} parent=5 // pred_fallthru
        _
      %p311 = scmp.le.s32.totalorder 1, %s22
      %p312 = scmp.lt.s32.totalorder %s22, 5
      %p313 = pnand %p311, %p312
      %p314 = pneg %p313
      // Predicated region
      $region33: #{tpu_custom_call.1} parent=5 // pred_check
        _
      $region34: #{tpu_custom_call.1} parent=5 // pred_check_branch
        %316 = sbr.rel (%p313) target = $region36
      $region35: #{tpu_custom_call.1} parent=5 // pred_region
        %s317 = ssub.s32 %s22, 1
        %s318 = sand.u32 %s55, 1
        %s319 = scalar_lea.sflag [#allocation4], %s318
        %s320 = sand.u32 %s55, 1
        %s321 = smul.addr %s320, 16
        %s322 = scalar_lea.vmem [#allocation3], %s321
        // Predicated region
        $region37: #{tpu_custom_call.1} parent=35 // pred_check
          %p323 = pneg %p68
        $region38: #{tpu_custom_call.1} parent=35 // pred_check_branch
          %325 = sbr.rel (%p323) target = $region40
        $region39: #{tpu_custom_call.1} parent=35 // pred_region
          %327 = dma.done %s319, 256
        $region40: #{tpu_custom_call.1} parent=35 // pred_fallthru
          _
        %s328 = sand.u32 %s27, 1
        %s329 = scalar_lea.sflag [#allocation7], %s328
        %s330 = sand.u32 %s89, 1
        %s331 = smul.addr %s330, 16
        %s332 = scalar_lea.vmem [#allocation6], %s331
        // Predicated region
        $region41: #{tpu_custom_call.1} parent=35 // pred_check
          %p333 = pneg %p102
        $region42: #{tpu_custom_call.1} parent=35 // pred_check_branch
          %335 = sbr.rel (%p333) target = $region44
        $region43: #{tpu_custom_call.1} parent=35 // pred_region
          %337 = dma.done %s329, 256
        $region44: #{tpu_custom_call.1} parent=35 // pred_fallthru
          _
        %s338 = sand.u32 %s27, 1
        %s339 = scalar_lea.sflag [#allocation7], %s338
        %s340 = sand.u32 %s123, 1
        %s341 = smul.addr %s340, 40
        %s342 = scalar_lea.vmem [#allocation8], %s341
        // Predicated region
        $region45: #{tpu_custom_call.1} parent=35 // pred_check
          %p343 = pneg %p136
        $region46: #{tpu_custom_call.1} parent=35 // pred_check_branch
          %345 = sbr.rel (%p343) target = $region48
        $region47: #{tpu_custom_call.1} parent=35 // pred_region
          %347 = dma.done %s339, 640
        $region48: #{tpu_custom_call.1} parent=35 // pred_fallthru
          _
        %s348 = sand.u32 %s157, 1
        %s349 = scalar_lea.sflag [#allocation10], %s348
        %s350 = sand.u32 %s157, 1
        %s351 = smul.addr %s350, 40
        %s352 = scalar_lea.vmem [#allocation9], %s351
        // Predicated region
        $region49: #{tpu_custom_call.1} parent=35 // pred_check
          %p353 = pneg %p170
        $region50: #{tpu_custom_call.1} parent=35 // pred_check_branch
          %355 = sbr.rel (%p353) target = $region52
        $region51: #{tpu_custom_call.1} parent=35 // pred_region
          %357 = dma.done %s349, 640
        $region52: #{tpu_custom_call.1} parent=35 // pred_fallthru
          _
        %s358 = sand.u32 %s55, 1
        %s359 = scalar_lea.sflag [#allocation4], %s358
        %s360 = sand.u32 %s55, 1
        %s361 = smul.addr %s360, 16
        %s362 = scalar_lea.vmem [#allocation3], %s361
        %p363 = pneg %p68
        %p364 = pneg %p65
        %s365 = sand.u32 %s27, 1
        %s366 = scalar_lea.sflag [#allocation7], %s365
        %s367 = sand.u32 %s89, 1
        %s368 = smul.addr %s367, 16
        %s369 = scalar_lea.vmem [#allocation6], %s368
        %p370 = pneg %p102
        %p371 = pneg %p99
        %s372 = sand.u32 %s27, 1
        %s373 = scalar_lea.sflag [#allocation7], %s372
        %s374 = sand.u32 %s123, 1
        %s375 = smul.addr %s374, 40
        %s376 = scalar_lea.vmem [#allocation8], %s375
        %p377 = pneg %p136
        %p378 = pneg %p133
        %s379 = sand.u32 %s157, 1
        %s380 = scalar_lea.sflag [#allocation10], %s379
        %s381 = sand.u32 %s157, 1
        %s382 = smul.addr %s381, 40
        %s383 = scalar_lea.vmem [#allocation9], %s382
        %p384 = pneg %p170
        %p385 = pneg %p167
        %p386 = pneg %p196
        %p387 = pneg %p193
        %s388 = sand.u32 %s183, 1
        %s389 = scalar_lea.sflag [#allocation5], %s388
        %s390 = sand.u32 %s183, 1
        %s391 = smul.addr %s390, 8
        %s392 = scalar_lea.vmem [#allocation11], %s391
        %s393 = smul.u32 %s31, 2
        %s394 = sadd.s32 %s393, %s32
        %p395 = scmp.lt.s32.totalorder %s394, 3
        %s396 = scalar_select %p395, %s394, 3
        %s397 = smul.u32 %s31, 2
        %s398 = sadd.s32 %s397, %s32
        %p399 = scmp.lt.s32.totalorder %s398, 3
        %s400 = scalar_select %p399, %s398, 3
        %s401 = smul.u32 %s31, 2
        %s402 = sadd.s32 %s401, %s32
        %p403 = scmp.lt.s32.totalorder %s402, 3
        %s404 = scalar_select %p403, %s402, 3
        %s405 = smul.u32 %s31, 2
        %s406 = sadd.s32 %s405, %s32
        %p407 = scmp.lt.s32.totalorder %s406, 3
        %s408 = scalar_select %p407, %s406, 3
        %p409 = scmp.eq.s32.totalorder %s32, 0
        // Predicated region
        $region53: #{tpu_custom_call.1} parent=35 // pred_check
          %p410 = pneg %p409
        $region54: #{tpu_custom_call.1} parent=35 // pred_check_branch
          %412 = sbr.rel (%p410) target = $region56
        $region55: #{tpu_custom_call.1} parent=35 // pred_region
          %vm413 = vcmask 7168
          %414 = vst.msk [vmem:[#allocation2] sm:$0xff] %vm413, 0.0
        $region56: #{tpu_custom_call.1} parent=35 // pred_fallthru
          _
        %v415 = vld [vmem:[%s322] sm:$0xff]
        %v416 = vld [vmem:[%s322 + $0x8] sm:$0xff]
        %v417 = vld [vmem:[%s332] sm:$0xff]
        %v418 = vld [vmem:[%s332 + $0x8] sm:$0xff]
        %v419 = vld [vmem:[%s342] sm:$0xff]
        %v420 = vld [vmem:[%s342 + $0x8] sm:$0xff]
        %v421 = vld [vmem:[%s342 + $0x10] sm:$0xff]
        %v422 = vld [vmem:[%s342 + $0x18] sm:$0xff]
        %v423 = vld [vmem:[%s342 + $0x20] sm:$0xff]
        %v424 = vld [vmem:[%s352] sm:$0xff]
        %v425 = vld [vmem:[%s352 + $0x8] sm:$0xff]
        %v426 = vld [vmem:[%s352 + $0x10] sm:$0xff]
        %v427 = vld [vmem:[%s352 + $0x18] sm:$0xff]
        %v428 = vld [vmem:[%s352 + $0x20] sm:$0xff]
        %v429 = vlaneseq
        %v430 = vshrl.u32 %v429, 7
        %s431 = smul.u32 %s31, 2
        %s432 = sadd.s32 %s431, %s32
        %s433 = smul.u32 %s432, 8
        %v434 = vstv %s433
        %v435 = vadd.s32 %v434, %v430
        %vm436 = vcmp.lt.s32.totalorder %v435, 30
        %v437 = vsel %vm436, 1, 0
        %vm438 = vcmp.eq.s32.totalorder %v437, 1
        %v439 = vsel %vm438, %v415, 0.0
        %v440 = vsel %vm438, %v416, 0.0
        %v441 = vsel %vm438, %v417, 0.0
        %v442 = vsel %vm438, %v418, 0.0
        %v443 = vsel %vm438, %v419, 0.0
        %v444 = vsel %vm438, %v420, 0.0
        %v445 = vsel %vm438, %v421, 0.0
        %v446 = vsel %vm438, %v422, 0.0
        %v447 = vsel %vm438, %v423, 0.0
        %v448 = vsel %vm438, %v424, 0.0
        %v449 = vsel %vm438, %v425, 0.0
        %v450 = vsel %vm438, %v426, 0.0
        %v451 = vsel %vm438, %v427, 0.0
        %v452 = vsel %vm438, %v428, 0.0
        %v453 = vsub.f32 %v439, %v441
        %v454 = vsub.f32 %v440, %v442
        %v455 = vmul.f32 %v453, %v453
        %v456 = vmul.f32 %v454, %v454
        %vm457 = vcmask 302080
        %v458 = vsel %vm457, %v456, 0.0
        %v459 = vadd.f32 %v455, %v458
        %460 = vadd.xlane.f32.xlu0 %v459
        %v461 = vpop.xlane.xlu0 %460
        %vm462 = vcmask 752640
        %v463 = vsel %vm462, %v447, -inf
        %v464 = vmax.f32 %v443, %v463
        %v465 = vmax.f32 %v464, %v444
        %v466 = vmax.f32 %v445, %v446
        %v467 = vmax.f32 %v465, %v466
        %468 = vmax.xlane.f32.xlu0 %v467
        %v469 = vpop.xlane.xlu0 %468
        %v470 = vsub.f32 %v443, %v469
        %v471 = vsub.f32 %v444, %v469
        %v472 = vsub.f32 %v445, %v469
        %v473 = vsub.f32 %v446, %v469
        %v474 = vsub.f32 %v447, %v469
        %v475 = vmul.f32 %v470, 1.442695
        %v476 = vpow.pop %v475
        %v477 = vmul.f32 %v471, 1.442695
        %v478 = vpow.pop %v477
        %v479 = vmul.f32 %v472, 1.442695
        %v480 = vpow.pop %v479
        %v481 = vmul.f32 %v473, 1.442695
        %v482 = vpow.pop %v481
        %v483 = vmul.f32 %v474, 1.442695
        %v484 = vpow.pop %v483
        %v485 = vadd.f32 %v476, %v478
        %v486 = vadd.f32 %v485, %v480
        %v487 = vadd.f32 %v486, %v482
        %v488 = vsel %vm462, %v484, 0.0
        %v489 = vadd.f32 %v487, %v488
        %490 = vadd.xlane.f32.xlu0 %v489
        %v491 = vpop.xlane.xlu0 %490
        %v492 = vlog2.pop %v491
        %v493 = vmul.f32 %v492, 0.6931472
        %v494 = vmul.f32 %v448, %v470
        %v495 = vmul.f32 %v449, %v471
        %v496 = vmul.f32 %v450, %v472
        %v497 = vmul.f32 %v451, %v473
        %v498 = vmul.f32 %v452, %v474
        %v499 = vadd.f32 %v494, %v495
        %v500 = vadd.f32 %v499, %v496
        %v501 = vadd.f32 %v500, %v497
        %v502 = vsel %vm462, %v498, 0.0
        %v503 = vadd.f32 %v501, %v502
        %504 = vadd.xlane.f32.xlu0 %v503
        %v505 = vpop.xlane.xlu0 %504
        %v506 = vsub.f32 %v493, %v505
        %v507 = vmul.f32 %v461, 0.0009090909
        %v508 = vmul.f32 %v506, 0.033333335
        %v509 = vadd.f32 %v507, %v508
        %v510 = vsel %vm436, %v509, 0.0
        %v511 = vld [vmem:[#allocation2] sm:$0xff]
        %v512 = vadd.f32 %v511, %v510
        %vm513 = vcmask 7168
        %514 = vst.msk [vmem:[#allocation2] sm:$0xff] %vm513, %v512
        %p515 = scmp.eq.s32.totalorder %s32, 1
        // Predicated region
        $region57: #{tpu_custom_call.1} parent=35 // pred_check
          %p516 = pneg %p515
        $region58: #{tpu_custom_call.1} parent=35 // pred_check_branch
          %518 = sbr.rel (%p516) target = $region60
        $region59: #{tpu_custom_call.1} parent=35 // pred_region
          %v519 = vld [vmem:[#allocation2] sm:$0xff]
          %v520 = vsel %vm513, %v519, 0.0
          %v521 = vrot.slane %v520, 4
          %v522 = vadd.f32 %v520, %v521
          %v523 = vrot.slane %v522, 2
          %v524 = vadd.f32 %v522, %v523
          %v525 = vrot.slane %v524, 1
          %v526 = vadd.f32 %v524, %v525
          %528 = vset.pattern.permute.xlu0 0
          %529 = vperm.xlu0 %528, %v526
          %v530 = vpop.permute.xlu0 %529
          %532 = vst [vmem:[%s392] sm:$0xff] %v530
        $region60: #{tpu_custom_call.1} parent=35 // pred_fallthru
          _
        %s533 = sand.u32 %s183, 1
        %s534 = scalar_lea.sflag [#allocation5], %s533
        %s535 = sand.u32 %s183, 1
        %s536 = smul.addr %s535, 8
        %s537 = scalar_lea.vmem [#allocation11], %s536
        // Predicated region
        $region61: #{tpu_custom_call.1} parent=35 // pred_check
          %p538 = pneg %p193
        $region62: #{tpu_custom_call.1} parent=35 // pred_check_branch
          %540 = sbr.rel (%p538) target = $region64
        $region63: #{tpu_custom_call.1} parent=35 // pred_region
          %542 = vsyncadd %s534, 0
          %s543 = smul.addr %s31, 8
          %s544 = scalar_lea.hbm %s4, %s543
          %s546 = sshll.u32 %s537, 4
          %s547 = int_to_ptr.vmem [resolvable:$true] %s546
          %s548 = sshll.u32 %s544, 4
          %s549 = int_to_ptr.hbm [resolvable:$true] %s548
          %551 = dma.vmem_to_hbm [thread:$0]  %s547, 128, %s549, %s534
        $region64: #{tpu_custom_call.1} parent=35 // pred_fallthru
          _
      $region36: #{tpu_custom_call.1} parent=5 // pred_fallthru
        _
      %p552 = scmp.le.s32.totalorder 2, %s22
      // Predicated region
      $region65: #{tpu_custom_call.1} parent=5 // pred_check
        %p553 = pneg %p552
      $region66: #{tpu_custom_call.1} parent=5 // pred_check_branch
        %555 = sbr.rel (%p553) target = $region68
      $region67: #{tpu_custom_call.1} parent=5 // pred_region
        %s556 = ssub.s32 %s22, 2
        // Predicated region
        $region69: #{tpu_custom_call.1} parent=67 // pred_check
          %p557 = pneg %p199
        $region70: #{tpu_custom_call.1} parent=67 // pred_check_branch
          %559 = sbr.rel (%p557) target = $region72
        $region71: #{tpu_custom_call.1} parent=67 // pred_region
          %s560 = sand.u32 %s184, 1
          %s561 = scalar_lea.sflag [#allocation5], %s560
          %s562 = sand.u32 %s184, 1
          %s563 = smul.addr %s562, 8
          %s564 = scalar_lea.vmem [#allocation11], %s563
          %566 = dma.done %s561, 128
        $region72: #{tpu_custom_call.1} parent=67 // pred_fallthru
          _
      $region68: #{tpu_custom_call.1} parent=5 // pred_fallthru
        _
    $region6: #{tpu_custom_call.1} parent=1 // loop_footer
      %s26 = sadd.s32 1, %s22
    $region7: #{tpu_custom_call.1} parent=1 // loop_footer_branch
      %21 = sbr.rel target = $region3
    $region8: #{tpu_custom_call.1} parent=1 // loop_exit
      _
    %567 = vsyncpa [#allocation4], 1
    %s568 = scalar_lea.sflag [#allocation4], 1
    %569 = vsyncpa %s568, 1
    %570 = vsyncpa [#allocation7], 1
    %s571 = scalar_lea.sflag [#allocation7], 1
    %572 = vsyncpa %s571, 1
    %573 = vsyncpa [#allocation10], 1
    %s574 = scalar_lea.sflag [#allocation10], 1
    %575 = vsyncpa %s574, 1
    %576 = vsyncpa [#allocation5], 1
    %s577 = scalar_lea.sflag [#allocation5], 1
    %578 = vsyncpa %s577, 1

</llo_original>
